<compile_context>
chip_gen: v6e
topology: v6e:2x2x1
jax: 0.10.0
libtpu: 0.0.40
codegen_flags: <defaults>
</compile_context>

<pallas_src>
import jax
import jax.numpy as jnp
from jax.experimental import pallas as pl
from jax.experimental.pallas import tpu as pltpu


def _round_up(n, m):
    return ((n + m - 1) // m) * m


def _mlr_kernel(x_ref, const_ref, o_ref):
    # x_ref: (TB, C) in input dtype; const_ref: (3, C) f32; o_ref: (TB, C).
    x = x_ref[...].astype(jnp.float32)
    consts = const_ref[...]                     # (3, C) f32
    nw = consts[0:1, :]                         # -weight          (1, C)
    bias = consts[1:2, :]                       # 1 + beta^2       (1, C)
    scale = consts[2:3, :]                      # 1 / (c_hat+eps)  (1, C)
    # NtC_out = 1 / (bias + exp(-w * x)); pred = NtC_out * scale
    ntc = pl.reciprocal(bias + jnp.exp(nw * x), approx=False)
    o_ref[...] = (ntc * scale).astype(o_ref.dtype)


def _pick_batch_tile(B, target=512):
    """Multiple-of-8 row tile; >=2 grid steps for B>=16; <=7 rows of waste."""
    if B <= 8:
        return B                                # single full-dim block
    n_blocks = max(2 if B >= 16 else 1, pl.cdiv(B, target))
    tile = _round_up(pl.cdiv(B, n_blocks), 8)
    if tile >= B:
        return B                                # single full-dim block (any B)
    return tile


def modified_logistic_regression(x, weight_per_class, beta_per_class, eps=1e-8,
                                 *, batch_tile=None):
    """x: (B, C) f32 or bf16; weight/beta: (C,) f32. Returns pred: (B, C) in x.dtype."""
    B, C = x.shape
    if batch_tile is None:
        batch_tile = _pick_batch_tile(B)

    # --- per-class constant folding in the wrapper ((C,) vectors only) ---
    w = weight_per_class.astype(jnp.float32)
    b = beta_per_class.astype(jnp.float32)
    denom_bias = 1.0 + b * b                    # 1 + beta^2
    c_hat = 1.0 / denom_bias
    scale = 1.0 / (c_hat + eps)                 # exact fold of the outer divide
    consts = jnp.stack([-w, denom_bias, scale], axis=0)   # (3, C) f32

    grid = (pl.cdiv(B, batch_tile),)
    out = pl.pallas_call(
        _mlr_kernel,
        out_shape=jax.ShapeDtypeStruct((B, C), x.dtype),
        grid_spec=pltpu.PrefetchScalarGridSpec(
            num_scalar_prefetch=0,
            grid=grid,
            in_specs=[
                pl.BlockSpec((batch_tile, C), lambda i: (i, 0)),
                pl.BlockSpec((3, C), lambda i: (0, 0)),
            ],
            out_specs=pl.BlockSpec((batch_tile, C), lambda i: (i, 0)),
        ),
        compiler_params=pltpu.CompilerParams(
            dimension_semantics=("parallel",),
            vmem_limit_bytes=32 * 1024 * 1024,
        ),
    )(x, consts)
    return out


def reference(x, weight, beta, eps=1e-8):
    x = x.astype(jnp.float32)
    ntc = 1.0 / (1.0 + beta ** 2 + jnp.exp(-weight * x))
    c_hat = 1.0 / (1.0 + beta ** 2)
    return ntc / (c_hat + eps)


if __name__ == "__main__":
    num_classes = 1588          # module default (exercises ragged last dim: 1588 % 128 != 0)
    batch = 24                  # exercises grid=2 with a clipped final block (16 + 8)
    initial_weight = 1.0
    initial_beta = 1.0
    eps = 1e-8

    # Deterministic parameter init (matches nn.Parameter(initial * ones(C)))
    weight_per_class = initial_weight * jnp.ones((num_classes,), jnp.float32)
    beta_per_class = initial_beta * jnp.ones((num_classes,), jnp.float32)

    key = jax.random.PRNGKey(0)
    x = jax.random.normal(key, (batch, num_classes), jnp.float32)

    ref = reference(x, weight_per_class, beta_per_class, eps)

    # f32 I/O path
    pred = modified_logistic_regression(x, weight_per_class, beta_per_class, eps)
    pred = jax.block_until_ready(pred)
    assert pred.shape == (batch, num_classes)
    assert pred.dtype == jnp.float32
    assert jnp.allclose(pred, ref, rtol=1e-5, atol=1e-5), "f32 mismatch vs reference"

    # bf16 I/O path (halves HBM bytes; math stays f32 inside the kernel)
    x_bf16 = x.astype(jnp.bfloat16)
    pred_bf16 = modified_logistic_regression(x_bf16, weight_per_class, beta_per_class, eps)
    pred_bf16 = jax.block_until_ready(pred_bf16)
    assert pred_bf16.dtype == jnp.bfloat16
    assert jnp.allclose(pred_bf16.astype(jnp.float32), ref, rtol=5e-2, atol=5e-2), \
        "bf16 mismatch vs reference"

    print("KERNEL_OK")
</pallas_src>

<mosaic_0001>
module attributes {stable_mosaic.version = 11 : i64} {
  func.func @_mlr_kernel(%arg0: i32, %arg1: memref<16x1588xf32, #tpu.memory_space<vmem>>, %arg2: memref<3x1588xf32, #tpu.memory_space<vmem>>, %arg3: memref<16x1588xf32, #tpu.memory_space<vmem>>) attributes {dimension_semantics = [#tpu.dimension_semantics<parallel>], iteration_bounds = array<i64: 2>, scalar_prefetch = 0 : i64, scratch_operands = 0 : i64, tpu.core_type = #tpu.core_type<tc>, window_params = [{transform_indices = @transform_0, window_bounds = array<i64: 16, 1588>}, {pipeline_mode = #tpu.pipeline_mode<synchronous>, transform_indices = @transform_1, window_bounds = array<i64: 3, 1588>}, {transform_indices = @transform_2, window_bounds = array<i64: 16, 1588>}]} {
    %c0 = arith.constant 0 : index
    %c0_0 = arith.constant 0 : index
    %0 = vector.load %arg1[%c0, %c0_0] : memref<16x1588xf32, #tpu.memory_space<vmem>>, vector<16x1588xf32>
    %c0_1 = arith.constant 0 : index
    %c0_2 = arith.constant 0 : index
    %1 = vector.load %arg2[%c0_1, %c0_2] : memref<3x1588xf32, #tpu.memory_space<vmem>>, vector<3x1588xf32>
    %2 = vector.extract_strided_slice %1 {offsets = [0, 0], sizes = [1, 1588], strides = [1, 1]} : vector<3x1588xf32> to vector<1x1588xf32>
    %3 = vector.extract_strided_slice %1 {offsets = [1, 0], sizes = [1, 1588], strides = [1, 1]} : vector<3x1588xf32> to vector<1x1588xf32>
    %4 = vector.extract_strided_slice %1 {offsets = [2, 0], sizes = [1, 1588], strides = [1, 1]} : vector<3x1588xf32> to vector<1x1588xf32>
    %5 = vector.broadcast %2 : vector<1x1588xf32> to vector<16x1588xf32>
    %6 = arith.mulf %5, %0 : vector<16x1588xf32>
    %7 = math.exp %6 : vector<16x1588xf32>
    %8 = vector.broadcast %3 : vector<1x1588xf32> to vector<16x1588xf32>
    %9 = arith.addf %8, %7 : vector<16x1588xf32>
    %10 = tpu.reciprocal %9 : vector<16x1588xf32> -> vector<16x1588xf32>
    %11 = vector.broadcast %4 : vector<1x1588xf32> to vector<16x1588xf32>
    %12 = arith.mulf %10, %11 : vector<16x1588xf32>
    %c0_3 = arith.constant 0 : index
    %c0_4 = arith.constant 0 : index
    %13 = vector.load %arg3[%c0_3, %c0_4] : memref<16x1588xf32, #tpu.memory_space<vmem>>, vector<16x1588xf32>
    tpu.vector_store %arg3[%c0_3, %c0_4], %12 {strides = array<i32>} : memref<16x1588xf32, #tpu.memory_space<vmem>>, vector<16x1588xf32>,
    return
  }
  func.func @transform_0(%arg0: i32) -> (i32, i32) {
    %c0_i32 = arith.constant 0 : i32
    %c0_i32_0 = arith.constant 0 : i32
    return %arg0, %c0_i32 : i32, i32
  }
  func.func @transform_1(%arg0: i32) -> (i32, i32) {
    %c0_i32 = arith.constant 0 : i32
    %c0_i32_0 = arith.constant 0 : i32
    %c0_i32_1 = arith.constant 0 : i32
    return %c0_i32, %c0_i32_0 : i32, i32
  }
  func.func @transform_2(%arg0: i32) -> (i32, i32) {
    %c0_i32 = arith.constant 0 : i32
    %c0_i32_0 = arith.constant 0 : i32
    return %arg0, %c0_i32 : i32, i32
  }
}

</mosaic_0001>

<llo_original>
// kernel: tpu_custom_call.1
$region0: #{tpu_custom_call.1}
  #allocation0 [shape = 'u32[]', space=smem, size = 0x4, offset = 0x4, fixed_abs, tag = 'smem constant byte address 0x4 - core index']
  #allocation1 [shape = 'u32[144,128]{1,0:T(1,128)}', space=vmem, size = 0x12000, scoped, tag = 'internal scratch']
  %s0 = inlined_call_operand.hbm [shape: f32[24,1588], index: 0, kind: input, shape index: {}]
  %s1 = inlined_call_operand.hbm [shape: f32[3,1588], index: 1, kind: input, shape index: {}]
  %s2 = inlined_call_operand.hbm [shape: f32[24,1588], index: 2, kind: output, shape index: {}]
  %s3 = sld [smem:[#allocation0]]
  $region49: #{tpu_custom_call.1} parent=0
    _
  %s5 = ssub.s32 1, %s3
  %s6 = scalar_select 0, %s5, %s3
  $region1: #{tpu_custom_call.1} parent=0
    #allocation2 [shape = 'u8[212992]{0}', space=vmem, size = 0x34000, scoped, tag = 'input window, operand 0']
    #allocation3 [shape = 's32[2]{0}', space=sflag, size = 0x8, scoped, tag = 'scoped memory for tpu_custom_call.1']
    #allocation4 [shape = 's32[2]{0}', space=sflag, size = 0x8, scoped, tag = 'scoped memory for tpu_custom_call.1']
    #allocation5 [shape = 'u8[26624]{0}', space=vmem, size = 0x6800, scoped, tag = 'input window, operand 1, single buffered']
    #allocation6 [shape = 's32[1]{0}', space=sflag, size = 0x4, scoped, tag = 'scoped memory for tpu_custom_call.1']
    #allocation7 [shape = 'u8[212992]{0}', space=vmem, size = 0x34000, scoped, tag = 'output window, operand 0']
    %7 = vsyncpa [#allocation3], 0
    %s8 = scalar_lea.sflag [#allocation3], 1
    %9 = vsyncpa %s8, 0
    %10 = vsyncpa [#allocation6], 0
    %11 = vsyncpa [#allocation4], 0
    %s12 = scalar_lea.sflag [#allocation4], 1
    %13 = vsyncpa %s12, 0
    loop: start=0, step=1, limit=4
    $region2: #{tpu_custom_call.1} parent=1 // loop_pre_header
      _
    $region3: #{tpu_custom_call.1} parent=1 // loop_header
      %s15 = sphi 0, %s19
      %p16 = scmp.ge.s32.totalorder %s15, 4
      %s25 = sphi 0, %s27
      %s28 = sphi 0, %s25
      %s29 = sphi 0, %s28
      %s45 = sphi 0, %s29
      %s49 = sphi 0, %s49
      %s51 = sphi 0, %s49
      %s52 = sphi 0, %s51
      %s66 = sphi 0, %s52
      %s72 = sphi 0, %s74
      %s75 = sphi 0, %s72
      %s76 = sphi 0, %s75
      %s92 = sphi 0, %s76
    $region4: #{tpu_custom_call.1} parent=1 // loop_header_branch
      %18 = sbr.rel (%p16) target = $region8
    $region5: #{tpu_custom_call.1} parent=1 // loop_body
      %s20 = ssub.s32 %s15, 1
      %s21 = ssub.s32 %s15, 2
      %s22 = sadd.s32 %s15, 1
      %s23 = ssub.s32 %s15, %s22
      %p24 = scmp.eq.s32.totalorder %s23, 0
      %s26 = sadd.s32 %s25, 1
      %s27 = scalar_select %p24, %s25, %s26
      %p30 = pneg %p24
      %p31 = scmp.eq.s32.totalorder %s15, 1
      %p32 = por %p30, %p31
      %p33 = scmp.ne.s32.totalorder %s25, %s28
      %p34 = scmp.eq.s32.totalorder %s15, 0
      %p35 = por %p33, %p34
      %p36 = scmp.ne.s32.totalorder %s25, %s28
      %p37 = scmp.eq.s32.totalorder %s20, 1
      %p38 = por %p36, %p37
      %p39 = scmp.ne.s32.totalorder %s28, %s29
      %p40 = scmp.eq.s32.totalorder %s20, 0
      %p41 = por %p39, %p40
      %p42 = scmp.ne.s32.totalorder %s28, %s29
      %p43 = scmp.eq.s32.totalorder %s21, 1
      %p44 = por %p42, %p43
      %p46 = scmp.ne.s32.totalorder %s29, %s45
      %p47 = scmp.eq.s32.totalorder %s21, 0
      %p48 = por %p46, %p47
      %s50 = sadd.s32 %s49, 1
      %p53 = scmp.eq.s32.totalorder %s15, 1
      %p54 = scmp.ne.s32.totalorder %s49, %s51
      %p55 = scmp.eq.s32.totalorder %s15, 0
      %p56 = por %p54, %p55
      %p57 = scmp.ne.s32.totalorder %s49, %s51
      %p58 = scmp.eq.s32.totalorder %s20, 1
      %p59 = por %p57, %p58
      %p60 = scmp.ne.s32.totalorder %s51, %s52
      %p61 = scmp.eq.s32.totalorder %s20, 0
      %p62 = por %p60, %p61
      %p63 = scmp.ne.s32.totalorder %s51, %s52
      %p64 = scmp.eq.s32.totalorder %s21, 1
      %p65 = por %p63, %p64
      %p67 = scmp.ne.s32.totalorder %s52, %s66
      %p68 = scmp.eq.s32.totalorder %s21, 0
      %p69 = por %p67, %p68
      %s70 = ssub.s32 %s15, %s22
      %p71 = scmp.eq.s32.totalorder %s70, 0
      %s73 = sadd.s32 %s72, 1
      %s74 = scalar_select %p71, %s72, %s73
      %p77 = pneg %p71
      %p78 = scmp.eq.s32.totalorder %s15, 1
      %p79 = por %p77, %p78
      %p80 = scmp.ne.s32.totalorder %s72, %s75
      %p81 = scmp.eq.s32.totalorder %s15, 0
      %p82 = por %p80, %p81
      %p83 = scmp.ne.s32.totalorder %s72, %s75
      %p84 = scmp.eq.s32.totalorder %s20, 1
      %p85 = por %p83, %p84
      %p86 = scmp.ne.s32.totalorder %s75, %s76
      %p87 = scmp.eq.s32.totalorder %s20, 0
      %p88 = por %p86, %p87
      %p89 = scmp.ne.s32.totalorder %s75, %s76
      %p90 = scmp.eq.s32.totalorder %s21, 1
      %p91 = por %p89, %p90
      %p93 = scmp.ne.s32.totalorder %s76, %s92
      %p94 = scmp.eq.s32.totalorder %s21, 0
      %p95 = por %p93, %p94
      %p96 = scmp.le.s32.totalorder 1, %s15
      %p97 = scmp.lt.s32.totalorder %s15, 3
      %p98 = pnand %p96, %p97
      %p99 = pneg %p98
      // Predicated region
      $region9: #{tpu_custom_call.1} parent=5 // pred_check
        _
      $region10: #{tpu_custom_call.1} parent=5 // pred_check_branch
        %101 = sbr.rel (%p98) target = $region12
      $region11: #{tpu_custom_call.1} parent=5 // pred_region
        %s102 = ssub.s32 %s15, 1
        // Predicated region
        $region13: #{tpu_custom_call.1} parent=11 // pred_check
          %p103 = pneg %p62
        $region14: #{tpu_custom_call.1} parent=11 // pred_check_branch
          %105 = sbr.rel (%p103) target = $region16
        $region15: #{tpu_custom_call.1} parent=11 // pred_region
          %s107 = ssub.s32 832, 832
          %108 = vsyncadd [#allocation6], %s107
          %s110 = sshll.u32 [#allocation5], 4
          %s111 = int_to_ptr.vmem [resolvable:$true] %s110
          %113 = dma.hbm_to_vmem [thread:$0]  %s1, 832, %s111, [#allocation6]
        $region16: #{tpu_custom_call.1} parent=11 // pred_fallthru
          _
      $region12: #{tpu_custom_call.1} parent=5 // pred_fallthru
        _
      %p114 = scmp.lt.s32.totalorder %s15, 2
      // Predicated region
      $region17: #{tpu_custom_call.1} parent=5 // pred_check
        %p115 = pneg %p114
      $region18: #{tpu_custom_call.1} parent=5 // pred_check_branch
        %117 = sbr.rel (%p115) target = $region20
      $region19: #{tpu_custom_call.1} parent=5 // pred_region
        // Predicated region
        $region21: #{tpu_custom_call.1} parent=19 // pred_check
          %p118 = pneg %p35
        $region22: #{tpu_custom_call.1} parent=19 // pred_check_branch
          %120 = sbr.rel (%p118) target = $region24
        $region23: #{tpu_custom_call.1} parent=19 // pred_region
          %s121 = sand.u32 %s25, 1
          %s122 = scalar_lea.sflag [#allocation3], %s121
          %s123 = sand.u32 %s25, 1
          %s124 = smul.addr %s123, 208
          %s125 = scalar_lea.vmem [#allocation2], %s124
          %s126 = smul.u32 2, %s15
          %s127 = ssub.s32 3, %s126
          %p128 = scmp.lt.s32.totalorder %s127, 2
          %s129 = scalar_select %p128, %s127, 2
          %s130 = smul.u32 128, %s129
          %s131 = smul.u32 %s130, 13
          %s133 = ssub.s32 3328, %s131
          %134 = vsyncadd %s122, %s133
          %p135 = scmp.ne.s32.totalorder 0, %s131
          %s136 = smul.addr %s126, 13
          %s137 = smul.addr %s136, 128
          %s138 = scalar_lea.hbm %s0, %s137
          %s139 = smul.u32 104, %s129
          %s140 = sshll.u32 %s125, 4
          %s141 = int_to_ptr.vmem [resolvable:$true] %s140
          %s142 = sshll.u32 %s139, 4
          %146 = dma.hbm_to_vmem [thread:$0]  (%p135), %s138, %s142, %s141, %s122, 1664, 1664, 104
        $region24: #{tpu_custom_call.1} parent=19 // pred_fallthru
          _
      $region20: #{tpu_custom_call.1} parent=5 // pred_fallthru
        _
      %p147 = scmp.le.s32.totalorder 1, %s15
      %p148 = scmp.lt.s32.totalorder %s15, 3
      %p149 = pnand %p147, %p148
      %p150 = pneg %p149
      // Predicated region
      $region25: #{tpu_custom_call.1} parent=5 // pred_check
        _
      $region26: #{tpu_custom_call.1} parent=5 // pred_check_branch
        %152 = sbr.rel (%p149) target = $region28
      $region27: #{tpu_custom_call.1} parent=5 // pred_region
        %s153 = ssub.s32 %s15, 1
        %s154 = sand.u32 %s28, 1
        %s155 = scalar_lea.sflag [#allocation3], %s154
        %s156 = sand.u32 %s28, 1
        %s157 = smul.addr %s156, 208
        %s158 = scalar_lea.vmem [#allocation2], %s157
        // Predicated region
        $region29: #{tpu_custom_call.1} parent=27 // pred_check
          %p159 = pneg %p41
        $region30: #{tpu_custom_call.1} parent=27 // pred_check_branch
          %161 = sbr.rel (%p159) target = $region32
        $region31: #{tpu_custom_call.1} parent=27 // pred_region
          %162 = dma.done %s155, 3328
        $region32: #{tpu_custom_call.1} parent=27 // pred_fallthru
          _
        // Predicated region
        $region33: #{tpu_custom_call.1} parent=27 // pred_check
          %p163 = pneg %p62
        $region34: #{tpu_custom_call.1} parent=27 // pred_check_branch
          %165 = sbr.rel (%p163) target = $region36
        $region35: #{tpu_custom_call.1} parent=27 // pred_region
          %166 = dma.done [#allocation6], 832
        $region36: #{tpu_custom_call.1} parent=27 // pred_fallthru
          _
        %s167 = sand.u32 %s28, 1
        %s168 = scalar_lea.sflag [#allocation3], %s167
        %s169 = sand.u32 %s28, 1
        %s170 = smul.addr %s169, 208
        %s171 = scalar_lea.vmem [#allocation2], %s170
        %p172 = pneg %p41
        %p173 = pneg %p38
        %p174 = pneg %p62
        %p175 = pneg %p59
        %p176 = pneg %p88
        %p177 = pneg %p85
        %s178 = sand.u32 %s75, 1
        %s179 = scalar_lea.sflag [#allocation4], %s178
        %s180 = sand.u32 %s75, 1
        %s181 = smul.addr %s180, 208
        %s182 = scalar_lea.vmem [#allocation7], %s181
        %s183 = smul.u32 2, %s20
        %s184 = ssub.s32 3, %s183
        %p185 = scmp.lt.s32.totalorder %s184, 2
        %s186 = scalar_select %p185, %s184, 2
        %s187 = smul.u32 128, %s186
        %s188 = smul.u32 %s187, 13
        %s189 = smul.u32 2, %s20
        %s190 = ssub.s32 3, %s189
        %p191 = scmp.lt.s32.totalorder %s190, 2
        %s192 = scalar_select %p191, %s190, 2
        %s193 = smul.u32 128, %s192
        %s194 = smul.u32 %s193, 13
        %v195 = vld [vmem:[%s158] sm:$0xff]
        %v196 = vld [vmem:[%s158 + $0x8] sm:$0xff]
        %v197 = vld [vmem:[%s158 + $0x10] sm:$0xff]
        %v198 = vld [vmem:[%s158 + $0x18] sm:$0xff]
        %v199 = vld [vmem:[%s158 + $0x20] sm:$0xff]
        %v200 = vld [vmem:[%s158 + $0x28] sm:$0xff]
        %v201 = vld [vmem:[%s158 + $0x30] sm:$0xff]
        %v202 = vld [vmem:[%s158 + $0x38] sm:$0xff]
        %v203 = vld [vmem:[%s158 + $0x40] sm:$0xff]
        %v204 = vld [vmem:[%s158 + $0x48] sm:$0xff]
        %v205 = vld [vmem:[%s158 + $0x50] sm:$0xff]
        %v206 = vld [vmem:[%s158 + $0x58] sm:$0xff]
        %v207 = vld [vmem:[%s158 + $0x60] sm:$0xff]
        %v208 = vld [vmem:[%s158 + $0x68] sm:$0xff]
        %v209 = vld [vmem:[%s158 + $0x70] sm:$0xff]
        %v210 = vld [vmem:[%s158 + $0x78] sm:$0xff]
        %v211 = vld [vmem:[%s158 + $0x80] sm:$0xff]
        %v212 = vld [vmem:[%s158 + $0x88] sm:$0xff]
        %v213 = vld [vmem:[%s158 + $0x90] sm:$0xff]
        %v214 = vld [vmem:[%s158 + $0x98] sm:$0xff]
        %v215 = vld [vmem:[%s158 + $0xa0] sm:$0xff]
        %v216 = vld [vmem:[%s158 + $0xa8] sm:$0xff]
        %v217 = vld [vmem:[%s158 + $0xb0] sm:$0xff]
        %v218 = vld [vmem:[%s158 + $0xb8] sm:$0xff]
        %v219 = vld [vmem:[%s158 + $0xc0] sm:$0xff]
        %v220 = vld [vmem:[%s158 + $0xc8] sm:$0xff]
        %v221 = vld [vmem:[#allocation5] sm:$0x77]
        %v222 = vld [vmem:[#allocation5 + $0x8] sm:$0x77]
        %v223 = vld [vmem:[#allocation5 + $0x10] sm:$0x77]
        %v224 = vld [vmem:[#allocation5 + $0x18] sm:$0x77]
        %v225 = vld [vmem:[#allocation5 + $0x20] sm:$0x77]
        %v226 = vld [vmem:[#allocation5 + $0x28] sm:$0x77]
        %v227 = vld [vmem:[#allocation5 + $0x30] sm:$0x7]
        %v235 = vlaneseq
        %v236 = vshrl.u32 %v235, 7
        %v237 = vsub.s32 0, %v236
        %v238 = vrot.slane %v221, %v237
        %v239 = vlaneseq
        %v240 = vshrl.u32 %v239, 7
        %v241 = vsub.s32 4, %v240
        %v242 = vrot.slane %v221, %v241
        %v243 = vlaneseq
        %v244 = vshrl.u32 %v243, 7
        %v245 = vsub.s32 0, %v244
        %v246 = vrot.slane %v222, %v245
        %v247 = vlaneseq
        %v248 = vshrl.u32 %v247, 7
        %v249 = vsub.s32 4, %v248
        %v250 = vrot.slane %v222, %v249
        %v251 = vlaneseq
        %v252 = vshrl.u32 %v251, 7
        %v253 = vsub.s32 0, %v252
        %v254 = vrot.slane %v223, %v253
        %v255 = vlaneseq
        %v256 = vshrl.u32 %v255, 7
        %v257 = vsub.s32 4, %v256
        %v258 = vrot.slane %v223, %v257
        %v259 = vlaneseq
        %v260 = vshrl.u32 %v259, 7
        %v261 = vsub.s32 0, %v260
        %v262 = vrot.slane %v224, %v261
        %v263 = vlaneseq
        %v264 = vshrl.u32 %v263, 7
        %v265 = vsub.s32 4, %v264
        %v266 = vrot.slane %v224, %v265
        %v267 = vlaneseq
        %v268 = vshrl.u32 %v267, 7
        %v269 = vsub.s32 0, %v268
        %v270 = vrot.slane %v225, %v269
        %v271 = vlaneseq
        %v272 = vshrl.u32 %v271, 7
        %v273 = vsub.s32 4, %v272
        %v274 = vrot.slane %v225, %v273
        %v275 = vlaneseq
        %v276 = vshrl.u32 %v275, 7
        %v277 = vsub.s32 0, %v276
        %v278 = vrot.slane %v226, %v277
        %v279 = vlaneseq
        %v280 = vshrl.u32 %v279, 7
        %v281 = vsub.s32 4, %v280
        %v282 = vrot.slane %v226, %v281
        %v283 = vlaneseq
        %v284 = vshrl.u32 %v283, 7
        %v285 = vsub.s32 0, %v284
        %v286 = vrot.slane %v227, %v285
        %v300 = vlaneseq
        %v301 = vshrl.u32 %v300, 7
        %v302 = vsub.s32 0, %v301
        %v303 = vrot.slane %v238, %v302
        %v304 = vlaneseq
        %v305 = vshrl.u32 %v304, 7
        %v306 = vsub.s32 0, %v305
        %v307 = vrot.slane %v242, %v306
        %v308 = vlaneseq
        %v309 = vshrl.u32 %v308, 7
        %v310 = vsub.s32 0, %v309
        %v311 = vrot.slane %v246, %v310
        %v312 = vlaneseq
        %v313 = vshrl.u32 %v312, 7
        %v314 = vsub.s32 0, %v313
        %v315 = vrot.slane %v250, %v314
        %v316 = vlaneseq
        %v317 = vshrl.u32 %v316, 7
        %v318 = vsub.s32 0, %v317
        %v319 = vrot.slane %v254, %v318
        %v320 = vlaneseq
        %v321 = vshrl.u32 %v320, 7
        %v322 = vsub.s32 0, %v321
        %v323 = vrot.slane %v258, %v322
        %v324 = vlaneseq
        %v325 = vshrl.u32 %v324, 7
        %v326 = vsub.s32 0, %v325
        %v327 = vrot.slane %v262, %v326
        %v328 = vlaneseq
        %v329 = vshrl.u32 %v328, 7
        %v330 = vsub.s32 0, %v329
        %v331 = vrot.slane %v266, %v330
        %v332 = vlaneseq
        %v333 = vshrl.u32 %v332, 7
        %v334 = vsub.s32 0, %v333
        %v335 = vrot.slane %v270, %v334
        %v336 = vlaneseq
        %v337 = vshrl.u32 %v336, 7
        %v338 = vsub.s32 0, %v337
        %v339 = vrot.slane %v274, %v338
        %v340 = vlaneseq
        %v341 = vshrl.u32 %v340, 7
        %v342 = vsub.s32 0, %v341
        %v343 = vrot.slane %v278, %v342
        %v344 = vlaneseq
        %v345 = vshrl.u32 %v344, 7
        %v346 = vsub.s32 0, %v345
        %v347 = vrot.slane %v282, %v346
        %v348 = vlaneseq
        %v349 = vshrl.u32 %v348, 7
        %v350 = vsub.s32 0, %v349
        %v351 = vrot.slane %v286, %v350
        %v352 = vmul.f32 %v303, %v195
        %v353 = vmul.f32 %v307, %v196
        %v354 = vmul.f32 %v311, %v197
        %v355 = vmul.f32 %v315, %v198
        %v356 = vmul.f32 %v319, %v199
        %v357 = vmul.f32 %v323, %v200
        %v358 = vmul.f32 %v327, %v201
        %v359 = vmul.f32 %v331, %v202
        %v360 = vmul.f32 %v335, %v203
        %v361 = vmul.f32 %v339, %v204
        %v362 = vmul.f32 %v343, %v205
        %v363 = vmul.f32 %v347, %v206
        %v364 = vmul.f32 %v351, %v207
        %v365 = vmul.f32 %v303, %v208
        %v366 = vmul.f32 %v307, %v209
        %v367 = vmul.f32 %v311, %v210
        %v368 = vmul.f32 %v315, %v211
        %v369 = vmul.f32 %v319, %v212
        %v370 = vmul.f32 %v323, %v213
        %v371 = vmul.f32 %v327, %v214
        %v372 = vmul.f32 %v331, %v215
        %v373 = vmul.f32 %v335, %v216
        %v374 = vmul.f32 %v339, %v217
        %v375 = vmul.f32 %v343, %v218
        %v376 = vmul.f32 %v347, %v219
        %v377 = vmul.f32 %v351, %v220
        %v378 = vmul.f32 %v352, 1.442695
        %v379 = vpow.pop %v378
        %v380 = vmul.f32 %v353, 1.442695
        %v381 = vpow.pop %v380
        %v382 = vmul.f32 %v354, 1.442695
        %v383 = vpow.pop %v382
        %v384 = vmul.f32 %v355, 1.442695
        %v385 = vpow.pop %v384
        %v386 = vmul.f32 %v356, 1.442695
        %v387 = vpow.pop %v386
        %v388 = vmul.f32 %v357, 1.442695
        %v389 = vpow.pop %v388
        %v390 = vmul.f32 %v358, 1.442695
        %v391 = vpow.pop %v390
        %v392 = vmul.f32 %v359, 1.442695
        %v393 = vpow.pop %v392
        %v394 = vmul.f32 %v360, 1.442695
        %v395 = vpow.pop %v394
        %v396 = vmul.f32 %v361, 1.442695
        %v397 = vpow.pop %v396
        %v398 = vmul.f32 %v362, 1.442695
        %v399 = vpow.pop %v398
        %v400 = vmul.f32 %v363, 1.442695
        %v401 = vpow.pop %v400
        %v402 = vmul.f32 %v364, 1.442695
        %v403 = vpow.pop %v402
        %v404 = vmul.f32 %v365, 1.442695
        %v405 = vpow.pop %v404
        %v406 = vmul.f32 %v366, 1.442695
        %v407 = vpow.pop %v406
        %v408 = vmul.f32 %v367, 1.442695
        %v409 = vpow.pop %v408
        %v410 = vmul.f32 %v368, 1.442695
        %v411 = vpow.pop %v410
        %v412 = vmul.f32 %v369, 1.442695
        %v413 = vpow.pop %v412
        %v414 = vmul.f32 %v370, 1.442695
        %v415 = vpow.pop %v414
        %v416 = vmul.f32 %v371, 1.442695
        %v417 = vpow.pop %v416
        %v418 = vmul.f32 %v372, 1.442695
        %v419 = vpow.pop %v418
        %v420 = vmul.f32 %v373, 1.442695
        %v421 = vpow.pop %v420
        %v422 = vmul.f32 %v374, 1.442695
        %v423 = vpow.pop %v422
        %v424 = vmul.f32 %v375, 1.442695
        %v425 = vpow.pop %v424
        %v426 = vmul.f32 %v376, 1.442695
        %v427 = vpow.pop %v426
        %v428 = vmul.f32 %v377, 1.442695
        %v429 = vpow.pop %v428
        %v430 = vlaneseq
        %v431 = vshrl.u32 %v430, 7
        %v432 = vsub.s32 1, %v431
        %v433 = vrot.slane %v221, %v432
        %v434 = vlaneseq
        %v435 = vshrl.u32 %v434, 7
        %v436 = vsub.s32 5, %v435
        %v437 = vrot.slane %v221, %v436
        %v438 = vlaneseq
        %v439 = vshrl.u32 %v438, 7
        %v440 = vsub.s32 1, %v439
        %v441 = vrot.slane %v222, %v440
        %v442 = vlaneseq
        %v443 = vshrl.u32 %v442, 7
        %v444 = vsub.s32 5, %v443
        %v445 = vrot.slane %v222, %v444
        %v446 = vlaneseq
        %v447 = vshrl.u32 %v446, 7
        %v448 = vsub.s32 1, %v447
        %v449 = vrot.slane %v223, %v448
        %v450 = vlaneseq
        %v451 = vshrl.u32 %v450, 7
        %v452 = vsub.s32 5, %v451
        %v453 = vrot.slane %v223, %v452
        %v454 = vlaneseq
        %v455 = vshrl.u32 %v454, 7
        %v456 = vsub.s32 1, %v455
        %v457 = vrot.slane %v224, %v456
        %v458 = vlaneseq
        %v459 = vshrl.u32 %v458, 7
        %v460 = vsub.s32 5, %v459
        %v461 = vrot.slane %v224, %v460
        %v462 = vlaneseq
        %v463 = vshrl.u32 %v462, 7
        %v464 = vsub.s32 1, %v463
        %v465 = vrot.slane %v225, %v464
        %v466 = vlaneseq
        %v467 = vshrl.u32 %v466, 7
        %v468 = vsub.s32 5, %v467
        %v469 = vrot.slane %v225, %v468
        %v470 = vlaneseq
        %v471 = vshrl.u32 %v470, 7
        %v472 = vsub.s32 1, %v471
        %v473 = vrot.slane %v226, %v472
        %v474 = vlaneseq
        %v475 = vshrl.u32 %v474, 7
        %v476 = vsub.s32 5, %v475
        %v477 = vrot.slane %v226, %v476
        %v478 = vlaneseq
        %v479 = vshrl.u32 %v478, 7
        %v480 = vsub.s32 1, %v479
        %v481 = vrot.slane %v227, %v480
        %v495 = vlaneseq
        %v496 = vshrl.u32 %v495, 7
        %v497 = vsub.s32 1, %v496
        %v498 = vrot.slane %v433, %v497
        %v499 = vlaneseq
        %v500 = vshrl.u32 %v499, 7
        %v501 = vsub.s32 1, %v500
        %v502 = vrot.slane %v437, %v501
        %v503 = vlaneseq
        %v504 = vshrl.u32 %v503, 7
        %v505 = vsub.s32 1, %v504
        %v506 = vrot.slane %v441, %v505
        %v507 = vlaneseq
        %v508 = vshrl.u32 %v507, 7
        %v509 = vsub.s32 1, %v508
        %v510 = vrot.slane %v445, %v509
        %v511 = vlaneseq
        %v512 = vshrl.u32 %v511, 7
        %v513 = vsub.s32 1, %v512
        %v514 = vrot.slane %v449, %v513
        %v515 = vlaneseq
        %v516 = vshrl.u32 %v515, 7
        %v517 = vsub.s32 1, %v516
        %v518 = vrot.slane %v453, %v517
        %v519 = vlaneseq
        %v520 = vshrl.u32 %v519, 7
        %v521 = vsub.s32 1, %v520
        %v522 = vrot.slane %v457, %v521
        %v523 = vlaneseq
        %v524 = vshrl.u32 %v523, 7
        %v525 = vsub.s32 1, %v524
        %v526 = vrot.slane %v461, %v525
        %v527 = vlaneseq
        %v528 = vshrl.u32 %v527, 7
        %v529 = vsub.s32 1, %v528
        %v530 = vrot.slane %v465, %v529
        %v531 = vlaneseq
        %v532 = vshrl.u32 %v531, 7
        %v533 = vsub.s32 1, %v532
        %v534 = vrot.slane %v469, %v533
        %v535 = vlaneseq
        %v536 = vshrl.u32 %v535, 7
        %v537 = vsub.s32 1, %v536
        %v538 = vrot.slane %v473, %v537
        %v539 = vlaneseq
        %v540 = vshrl.u32 %v539, 7
        %v541 = vsub.s32 1, %v540
        %v542 = vrot.slane %v477, %v541
        %v543 = vlaneseq
        %v544 = vshrl.u32 %v543, 7
        %v545 = vsub.s32 1, %v544
        %v546 = vrot.slane %v481, %v545
        %v547 = vadd.f32 %v498, %v379
        %v548 = vadd.f32 %v502, %v381
        %v549 = vadd.f32 %v506, %v383
        %v550 = vadd.f32 %v510, %v385
        %v551 = vadd.f32 %v514, %v387
        %v552 = vadd.f32 %v518, %v389
        %v553 = vadd.f32 %v522, %v391
        %v554 = vadd.f32 %v526, %v393
        %v555 = vadd.f32 %v530, %v395
        %v556 = vadd.f32 %v534, %v397
        %v557 = vadd.f32 %v538, %v399
        %v558 = vadd.f32 %v542, %v401
        %v559 = vadd.f32 %v546, %v403
        %v560 = vadd.f32 %v498, %v405
        %v561 = vadd.f32 %v502, %v407
        %v562 = vadd.f32 %v506, %v409
        %v563 = vadd.f32 %v510, %v411
        %v564 = vadd.f32 %v514, %v413
        %v565 = vadd.f32 %v518, %v415
        %v566 = vadd.f32 %v522, %v417
        %v567 = vadd.f32 %v526, %v419
        %v568 = vadd.f32 %v530, %v421
        %v569 = vadd.f32 %v534, %v423
        %v570 = vadd.f32 %v538, %v425
        %v571 = vadd.f32 %v542, %v427
        %v572 = vadd.f32 %v546, %v429
        %v573 = vrcp.pop %v547
        %v574 = vrcp.pop %v548
        %v575 = vrcp.pop %v549
        %v576 = vrcp.pop %v550
        %v577 = vrcp.pop %v551
        %v578 = vrcp.pop %v552
        %v579 = vrcp.pop %v553
        %v580 = vrcp.pop %v554
        %v581 = vrcp.pop %v555
        %v582 = vrcp.pop %v556
        %v583 = vrcp.pop %v557
        %v584 = vrcp.pop %v558
        %v585 = vrcp.pop %v559
        %v586 = vrcp.pop %v560
        %v587 = vrcp.pop %v561
        %v588 = vrcp.pop %v562
        %v589 = vrcp.pop %v563
        %v590 = vrcp.pop %v564
        %v591 = vrcp.pop %v565
        %v592 = vrcp.pop %v566
        %v593 = vrcp.pop %v567
        %v594 = vrcp.pop %v568
        %v595 = vrcp.pop %v569
        %v596 = vrcp.pop %v570
        %v597 = vrcp.pop %v571
        %v598 = vrcp.pop %v572
        %v599 = vlaneseq
        %v600 = vshrl.u32 %v599, 7
        %v601 = vsub.s32 2, %v600
        %v602 = vrot.slane %v221, %v601
        %v603 = vlaneseq
        %v604 = vshrl.u32 %v603, 7
        %v605 = vsub.s32 6, %v604
        %v606 = vrot.slane %v221, %v605
        %v607 = vlaneseq
        %v608 = vshrl.u32 %v607, 7
        %v609 = vsub.s32 2, %v608
        %v610 = vrot.slane %v222, %v609
        %v611 = vlaneseq
        %v612 = vshrl.u32 %v611, 7
        %v613 = vsub.s32 6, %v612
        %v614 = vrot.slane %v222, %v613
        %v615 = vlaneseq
        %v616 = vshrl.u32 %v615, 7
        %v617 = vsub.s32 2, %v616
        %v618 = vrot.slane %v223, %v617
        %v619 = vlaneseq
        %v620 = vshrl.u32 %v619, 7
        %v621 = vsub.s32 6, %v620
        %v622 = vrot.slane %v223, %v621
        %v623 = vlaneseq
        %v624 = vshrl.u32 %v623, 7
        %v625 = vsub.s32 2, %v624
        %v626 = vrot.slane %v224, %v625
        %v627 = vlaneseq
        %v628 = vshrl.u32 %v627, 7
        %v629 = vsub.s32 6, %v628
        %v630 = vrot.slane %v224, %v629
        %v631 = vlaneseq
        %v632 = vshrl.u32 %v631, 7
        %v633 = vsub.s32 2, %v632
        %v634 = vrot.slane %v225, %v633
        %v635 = vlaneseq
        %v636 = vshrl.u32 %v635, 7
        %v637 = vsub.s32 6, %v636
        %v638 = vrot.slane %v225, %v637
        %v639 = vlaneseq
        %v640 = vshrl.u32 %v639, 7
        %v641 = vsub.s32 2, %v640
        %v642 = vrot.slane %v226, %v641
        %v643 = vlaneseq
        %v644 = vshrl.u32 %v643, 7
        %v645 = vsub.s32 6, %v644
        %v646 = vrot.slane %v226, %v645
        %v647 = vlaneseq
        %v648 = vshrl.u32 %v647, 7
        %v649 = vsub.s32 2, %v648
        %v650 = vrot.slane %v227, %v649
        %v664 = vlaneseq
        %v665 = vshrl.u32 %v664, 7
        %v666 = vsub.s32 2, %v665
        %v667 = vrot.slane %v602, %v666
        %v668 = vlaneseq
        %v669 = vshrl.u32 %v668, 7
        %v670 = vsub.s32 2, %v669
        %v671 = vrot.slane %v606, %v670
        %v672 = vlaneseq
        %v673 = vshrl.u32 %v672, 7
        %v674 = vsub.s32 2, %v673
        %v675 = vrot.slane %v610, %v674
        %v676 = vlaneseq
        %v677 = vshrl.u32 %v676, 7
        %v678 = vsub.s32 2, %v677
        %v679 = vrot.slane %v614, %v678
        %v680 = vlaneseq
        %v681 = vshrl.u32 %v680, 7
        %v682 = vsub.s32 2, %v681
        %v683 = vrot.slane %v618, %v682
        %v684 = vlaneseq
        %v685 = vshrl.u32 %v684, 7
        %v686 = vsub.s32 2, %v685
        %v687 = vrot.slane %v622, %v686
        %v688 = vlaneseq
        %v689 = vshrl.u32 %v688, 7
        %v690 = vsub.s32 2, %v689
        %v691 = vrot.slane %v626, %v690
        %v692 = vlaneseq
        %v693 = vshrl.u32 %v692, 7
        %v694 = vsub.s32 2, %v693
        %v695 = vrot.slane %v630, %v694
        %v696 = vlaneseq
        %v697 = vshrl.u32 %v696, 7
        %v698 = vsub.s32 2, %v697
        %v699 = vrot.slane %v634, %v698
        %v700 = vlaneseq
        %v701 = vshrl.u32 %v700, 7
        %v702 = vsub.s32 2, %v701
        %v703 = vrot.slane %v638, %v702
        %v704 = vlaneseq
        %v705 = vshrl.u32 %v704, 7
        %v706 = vsub.s32 2, %v705
        %v707 = vrot.slane %v642, %v706
        %v708 = vlaneseq
        %v709 = vshrl.u32 %v708, 7
        %v710 = vsub.s32 2, %v709
        %v711 = vrot.slane %v646, %v710
        %v712 = vlaneseq
        %v713 = vshrl.u32 %v712, 7
        %v714 = vsub.s32 2, %v713
        %v715 = vrot.slane %v650, %v714
        %v716 = vmul.f32 %v573, %v667
        %v717 = vmul.f32 %v574, %v671
        %v718 = vmul.f32 %v575, %v675
        %v719 = vmul.f32 %v576, %v679
        %v720 = vmul.f32 %v577, %v683
        %v721 = vmul.f32 %v578, %v687
        %v722 = vmul.f32 %v579, %v691
        %v723 = vmul.f32 %v580, %v695
        %v724 = vmul.f32 %v581, %v699
        %v725 = vmul.f32 %v582, %v703
        %v726 = vmul.f32 %v583, %v707
        %v727 = vmul.f32 %v584, %v711
        %v728 = vmul.f32 %v585, %v715
        %v729 = vmul.f32 %v586, %v667
        %v730 = vmul.f32 %v587, %v671
        %v731 = vmul.f32 %v588, %v675
        %v732 = vmul.f32 %v589, %v679
        %v733 = vmul.f32 %v590, %v683
        %v734 = vmul.f32 %v591, %v687
        %v735 = vmul.f32 %v592, %v691
        %v736 = vmul.f32 %v593, %v695
        %v737 = vmul.f32 %v594, %v699
        %v738 = vmul.f32 %v595, %v703
        %v739 = vmul.f32 %v596, %v707
        %v740 = vmul.f32 %v597, %v711
        %v741 = vmul.f32 %v598, %v715
        %742 = vst [vmem:[%s182] sm:$0xff] %v716
        %743 = vst [vmem:[%s182 + $0x8] sm:$0xff] %v717
        %744 = vst [vmem:[%s182 + $0x10] sm:$0xff] %v718
        %745 = vst [vmem:[%s182 + $0x18] sm:$0xff] %v719
        %746 = vst [vmem:[%s182 + $0x20] sm:$0xff] %v720
        %747 = vst [vmem:[%s182 + $0x28] sm:$0xff] %v721
        %748 = vst [vmem:[%s182 + $0x30] sm:$0xff] %v722
        %749 = vst [vmem:[%s182 + $0x38] sm:$0xff] %v723
        %750 = vst [vmem:[%s182 + $0x40] sm:$0xff] %v724
        %751 = vst [vmem:[%s182 + $0x48] sm:$0xff] %v725
        %752 = vst [vmem:[%s182 + $0x50] sm:$0xff] %v726
        %753 = vst [vmem:[%s182 + $0x58] sm:$0xff] %v727
        %vm754 = vcmask 424960
        %755 = vst.msk [vmem:[%s182 + $0x60] sm:$0xff] %vm754, %v728
        %756 = vst [vmem:[%s182 + $0x68] sm:$0xff] %v729
        %757 = vst [vmem:[%s182 + $0x70] sm:$0xff] %v730
        %758 = vst [vmem:[%s182 + $0x78] sm:$0xff] %v731
        %759 = vst [vmem:[%s182 + $0x80] sm:$0xff] %v732
        %760 = vst [vmem:[%s182 + $0x88] sm:$0xff] %v733
        %761 = vst [vmem:[%s182 + $0x90] sm:$0xff] %v734
        %762 = vst [vmem:[%s182 + $0x98] sm:$0xff] %v735
        %763 = vst [vmem:[%s182 + $0xa0] sm:$0xff] %v736
        %764 = vst [vmem:[%s182 + $0xa8] sm:$0xff] %v737
        %765 = vst [vmem:[%s182 + $0xb0] sm:$0xff] %v738
        %766 = vst [vmem:[%s182 + $0xb8] sm:$0xff] %v739
        %767 = vst [vmem:[%s182 + $0xc0] sm:$0xff] %v740
        %768 = vst.msk [vmem:[%s182 + $0xc8] sm:$0xff] %vm754, %v741
        %s769 = sand.u32 %s75, 1
        %s770 = scalar_lea.sflag [#allocation4], %s769
        %s771 = sand.u32 %s75, 1
        %s772 = smul.addr %s771, 208
        %s773 = scalar_lea.vmem [#allocation7], %s772
        // Predicated region
        $region37: #{tpu_custom_call.1} parent=27 // pred_check
          %p774 = pneg %p85
        $region38: #{tpu_custom_call.1} parent=27 // pred_check_branch
          %776 = sbr.rel (%p774) target = $region40
        $region39: #{tpu_custom_call.1} parent=27 // pred_region
          %s777 = smul.u32 2, %s20
          %s778 = ssub.s32 3, %s777
          %p779 = scmp.lt.s32.totalorder %s778, 2
          %s780 = scalar_select %p779, %s778, 2
          %s781 = smul.u32 128, %s780
          %s782 = smul.u32 %s781, 13
          %s784 = ssub.s32 3328, %s782
          %785 = vsyncadd %s770, %s784
          %p786 = scmp.ne.s32.totalorder 0, %s782
          %s787 = smul.addr %s777, 13
          %s788 = smul.addr %s787, 128
          %s789 = scalar_lea.hbm %s2, %s788
          %s790 = smul.u32 104, %s780
          %s791 = sshll.u32 %s773, 4
          %s792 = int_to_ptr.vmem [resolvable:$true] %s791
          %s793 = sshll.u32 %s790, 4
          %797 = dma.vmem_to_hbm [thread:$0]  (%p786), %s792, %s793, %s789, %s770, 1664, 1664, 104
        $region40: #{tpu_custom_call.1} parent=27 // pred_fallthru
          _
      $region28: #{tpu_custom_call.1} parent=5 // pred_fallthru
        _
      %p798 = scmp.le.s32.totalorder 2, %s15
      // Predicated region
      $region41: #{tpu_custom_call.1} parent=5 // pred_check
        %p799 = pneg %p798
      $region42: #{tpu_custom_call.1} parent=5 // pred_check_branch
        %801 = sbr.rel (%p799) target = $region44
      $region43: #{tpu_custom_call.1} parent=5 // pred_region
        %s802 = ssub.s32 %s15, 2
        // Predicated region
        $region45: #{tpu_custom_call.1} parent=43 // pred_check
          %p803 = pneg %p91
        $region46: #{tpu_custom_call.1} parent=43 // pred_check_branch
          %805 = sbr.rel (%p803) target = $region48
        $region47: #{tpu_custom_call.1} parent=43 // pred_region
          %s806 = sand.u32 %s76, 1
          %s807 = scalar_lea.sflag [#allocation4], %s806
          %s808 = sand.u32 %s76, 1
          %s809 = smul.addr %s808, 208
          %s810 = scalar_lea.vmem [#allocation7], %s809
          %811 = dma.done %s807, 3328
        $region48: #{tpu_custom_call.1} parent=43 // pred_fallthru
          _
      $region44: #{tpu_custom_call.1} parent=5 // pred_fallthru
        _
    $region6: #{tpu_custom_call.1} parent=1 // loop_footer
      %s19 = sadd.s32 1, %s15
    $region7: #{tpu_custom_call.1} parent=1 // loop_footer_branch
      %14 = sbr.rel target = $region3
    $region8: #{tpu_custom_call.1} parent=1 // loop_exit
      _
    %812 = vsyncpa [#allocation3], 1
    %s813 = scalar_lea.sflag [#allocation3], 1
    %814 = vsyncpa %s813, 1
    %815 = vsyncpa [#allocation6], 1
    %816 = vsyncpa [#allocation4], 1
    %s817 = scalar_lea.sflag [#allocation4], 1
    %818 = vsyncpa %s817, 1

</llo_original>
